<compile_context>
chip_gen: v7x
topology: tpu7x:2x2x1
jax: 0.10.0
libtpu: 0.0.40
codegen_flags: <defaults>
</compile_context>

<pallas_src>
import functools

import jax
import jax.numpy as jnp
from jax import lax
from jax.experimental import pallas as pl
from jax.experimental.pallas import tpu as pltpu


# ---------------------------------------------------------------------------
# Path A: table resident in VMEM (small/medium vocab) -> pure vector gather.
# ---------------------------------------------------------------------------
def _embed_vmem_kernel(ids_ref, w_ref, out_ref, *, rows_per_tile, chunk):
    """
    ids_ref : SMEM (n_total,) int32          -- scalar-prefetched token ids
    w_ref   : VMEM (vocab, dim_p)            -- whole table, resident (constant index_map)
    out_ref : VMEM (rows_per_tile, dim_p)
    """
    base = pl.program_id(0) * rows_per_tile
    num_chunks = rows_per_tile // chunk

    def body(c, carry):
        src0 = base + c * chunk
        dst0 = c * chunk
        for k in range(chunk):
            # Dynamic first-axis index load/store: no DMA descriptors, no extra
            # HBM traffic beyond the one-time table load done by the pipeline.
            out_ref[dst0 + k] = w_ref[ids_ref[src0 + k]]
        return carry

    lax.fori_loop(0, num_chunks, body, 0)


# ---------------------------------------------------------------------------
# Path B: table in HBM -> per-row async DMA gather straight into the output block.
# ---------------------------------------------------------------------------
def _embed_hbm_gather_kernel(ids_ref, w_hbm, out_ref, sem, *, rows_per_tile, chunk):
    """
    ids_ref : SMEM (n_total,) int32          -- scalar-prefetched token ids
    w_hbm   : HBM  (vocab, dim_p)            -- memory_space=pl.ANY, manual DMA
    out_ref : VMEM (rows_per_tile, dim_p)    -- DMA destination (no scratch copy)
    sem     : single DMA semaphore shared by every row copy in this tile
    """
    base = pl.program_id(0) * rows_per_tile
    num_chunks = rows_per_tile // chunk

    # Phase 1: issue every row gather for this tile so the DMA engine has
    # rows_per_tile transfers in flight.  All SMEM id reads of a chunk happen
    # before any wait (waits break SMEM sst->sld forwarding).
    def issue(c, carry):
        src0 = base + c * chunk
        dst0 = c * chunk
        for k in range(chunk):
            row = ids_ref[src0 + k]
            pltpu.make_async_copy(w_hbm.at[row], out_ref.at[dst0 + k], sem).start()
        return carry

    lax.fori_loop(0, num_chunks, issue, 0)

    # Phase 2: drain.  Every copy has an identical (dim_p,) slice shape and
    # signals the same semaphore, so one wait per issued copy with an
    # identically-shaped descriptor consumes exactly the signalled amount.
    def drain(c, carry):
        for _ in range(chunk):
            pltpu.make_async_copy(w_hbm.at[0], out_ref.at[0], sem).wait()
        return carry

    lax.fori_loop(0, num_chunks, drain, 0)


def parallel_embedding(token_ids, shard_weights, *, rows_per_tile=256,
                       force_hbm_gather=False,
                       vmem_table_budget_bytes=8 * 1024 * 1024):
    """
    token_ids     : (B, S) int32, values in [0, vocab_size)
    shard_weights : (world_size, part_size, dim)  (all vocab shards, rank order)
    returns       : (B, S, dim) embeddings (== masked shard lookups summed by all-reduce)
    """
    world_size, part_size, dim = shard_weights.shape
    vocab = world_size * part_size
    B, S = token_ids.shape
    N = B * S
    dtype = shard_weights.dtype
    itemsize = jnp.dtype(dtype).itemsize
    sublane = {4: 8, 2: 16, 1: 32}[itemsize]   # sublane packing per dtype width
    chunk = 8

    # Shards are contiguous slices of the vocab in rank order, so stacking them
    # is exactly the full embedding table (the all-reduce(SUM) becomes a gather).
    weight = shard_weights.reshape(vocab, dim)

    # Lane-dense last dim: pad to a multiple of 128 (sub-128 last dims lower to
    # masked vst.msk partial stores), slice the padding off afterwards.
    dim_p = pl.cdiv(dim, 128) * 128
    if dim_p != dim:
        weight = jnp.pad(weight, ((0, 0), (0, dim_p - dim)))

    # Tile sizing: multiple of the dtype sublane, clamped to the (rounded) token
    # count and to a VMEM budget (the output block is double-buffered by the pipeline).
    max_rows_by_vmem = max(sublane, (8 * 1024 * 1024) // (2 * dim_p * itemsize))
    rows = min(rows_per_tile, max_rows_by_vmem)
    rows = max(sublane, (rows // sublane) * sublane)
    n_rounded = pl.cdiv(N, sublane) * sublane
    rows = min(rows, n_rounded)
    rows = max(sublane, (rows // sublane) * sublane)
    assert rows % chunk == 0

    # Flatten ids and pad to a whole number of tiles (padded rows gather row 0
    # and are sliced off).  Ids are scalar-prefetched into SMEM.
    ids_flat = token_ids.reshape(N).astype(jnp.int32)
    n_pad = (-N) % rows
    if n_pad:
        ids_flat = jnp.concatenate([ids_flat, jnp.zeros((n_pad,), jnp.int32)])
    n_total = N + n_pad
    n_tiles = n_total // rows

    table_bytes = vocab * dim_p * itemsize
    use_vmem_table = (not force_hbm_gather) and table_bytes <= vmem_table_budget_bytes

    out_spec = pl.BlockSpec((rows, dim_p), lambda i, ids: (i, 0))
    cost = pl.CostEstimate(
        flops=0, transcendentals=0,
        bytes_accessed=int(2 * n_total * dim_p * itemsize + 4 * n_total))
    cparams = pltpu.CompilerParams(dimension_semantics=("parallel",))

    if use_vmem_table:
        kernel = functools.partial(_embed_vmem_kernel, rows_per_tile=rows, chunk=chunk)
        grid_spec = pltpu.PrefetchScalarGridSpec(
            num_scalar_prefetch=1,
            grid=(n_tiles,),
            # Constant block index -> the table is DMA'd to VMEM once and stays resident.
            in_specs=[pl.BlockSpec((vocab, dim_p), lambda i, ids: (0, 0))],
            out_specs=out_spec,
            scratch_shapes=[],
        )
    else:
        kernel = functools.partial(_embed_hbm_gather_kernel, rows_per_tile=rows, chunk=chunk)
        grid_spec = pltpu.PrefetchScalarGridSpec(
            num_scalar_prefetch=1,
            grid=(n_tiles,),
            in_specs=[pl.BlockSpec(memory_space=pl.ANY)],   # table stays in HBM
            out_specs=out_spec,
            scratch_shapes=[pltpu.SemaphoreType.DMA],        # one shared DMA semaphore
        )

    out_flat = pl.pallas_call(
        kernel,
        out_shape=jax.ShapeDtypeStruct((n_total, dim_p), weight.dtype),
        grid_spec=grid_spec,
        compiler_params=cparams,
        cost_estimate=cost,
    )(ids_flat, weight)

    return out_flat[:N, :dim].reshape(B, S, dim)


if __name__ == "__main__":
    init_std = 0.02
    key = jax.random.PRNGKey(0)
    k_w, k_ids, k_w2, k_ids2 = jax.random.split(key, 4)

    # ---- Test 1: module-sized demo (B=2, S=8, vocab=64, dim=128) -------------
    vocab_size, dim, world_size = 64, 128, 4
    part_size = vocab_size // world_size
    full_weight = init_std * jax.random.normal(k_w, (vocab_size, dim), jnp.float32)
    shard_weights = full_weight.reshape(world_size, part_size, dim)
    B, S = 2, 8
    token_ids = jax.random.randint(k_ids, (B, S), 0, vocab_size, jnp.int32)
    ref = full_weight[token_ids]

    # Default dispatch -> VMEM-resident fast path (table is tiny).
    out_fast = jax.block_until_ready(parallel_embedding(token_ids, shard_weights))
    assert out_fast.shape == (B, S, dim)
    assert jnp.allclose(out_fast, ref, atol=1e-6), "VMEM fast path mismatch"

    # Same inputs through the HBM-gather path.
    out_gather = jax.block_until_ready(
        parallel_embedding(token_ids, shard_weights, force_hbm_gather=True))
    assert jnp.allclose(out_gather, ref, atol=1e-6), "HBM gather path mismatch"

    # ---- Test 2: multi-tile HBM gather (exercises chunked loops, 2 grid tiles) ----
    vocab2, dim2, ws2 = 512, 256, 4
    full_w2 = init_std * jax.random.normal(k_w2, (vocab2, dim2), jnp.float32)
    shard_w2 = full_w2.reshape(ws2, vocab2 // ws2, dim2)
    B2, S2 = 2, 256
    ids2 = jax.random.randint(k_ids2, (B2, S2), 0, vocab2, jnp.int32)
    ref2 = full_w2[ids2]
    out2 = jax.block_until_ready(
        parallel_embedding(ids2, shard_w2, rows_per_tile=256, force_hbm_gather=True))
    assert jnp.allclose(out2, ref2, atol=1e-6), "multi-tile HBM gather mismatch"

    print("KERNEL_OK")
</pallas_src>

<mosaic_0001>
module attributes {stable_mosaic.version = 11 : i64} {
  func.func @_embed_vmem_kernel(%arg0: i32, %arg1: memref<16xi32, #tpu.memory_space<smem>>, %arg2: memref<64x128xf32, #tpu.memory_space<vmem>>, %arg3: memref<16x128xf32, #tpu.memory_space<vmem>>) attributes {dimension_semantics = [#tpu.dimension_semantics<parallel>], iteration_bounds = array<i64: 1>, scalar_prefetch = 1 : i64, scratch_operands = 0 : i64, tpu.core_type = #tpu.core_type<tc>, window_params = [{pipeline_mode = #tpu.pipeline_mode<synchronous>, transform_indices = @transform_0, window_bounds = array<i64: 64, 128>}, {transform_indices = @transform_1, window_bounds = array<i64: 16, 128>}]} {
    %c16_i32 = arith.constant 16 : i32
    %0 = arith.muli %arg0, %c16_i32 : i32
    %c0_i32 = arith.constant 0 : i32
    %c2_i32 = arith.constant 2 : i32
    %1 = arith.addi %c0_i32, %c2_i32 : i32
    %c1_i32 = arith.constant 1 : i32
    scf.for %arg4 = %c0_i32 to %1 step %c1_i32  : i32 {
      %c8_i32 = arith.constant 8 : i32
      %2 = arith.muli %arg4, %c8_i32 : i32
      %3 = arith.addi %0, %2 : i32
      %c8_i32_1 = arith.constant 8 : i32
      %4 = arith.muli %arg4, %c8_i32_1 : i32
      %c0_i32_2 = arith.constant 0 : i32
      %5 = arith.addi %3, %c0_i32_2 : i32
      %6 = arith.index_cast %5 : i32 to index
      %7 = memref.load %arg1[%6] : memref<16xi32, #tpu.memory_space<smem>>
      %8 = arith.index_cast %7 : i32 to index
      %c0 = arith.constant 0 : index
      %9 = vector.load %arg2[%8, %c0] : memref<64x128xf32, #tpu.memory_space<vmem>>, vector<1x128xf32>
      %10 = vector.shape_cast %9 : vector<1x128xf32> to vector<128xf32>
      %c0_i32_3 = arith.constant 0 : i32
      %11 = arith.addi %4, %c0_i32_3 : i32
      %12 = arith.index_cast %11 : i32 to index
      %c0_4 = arith.constant 0 : index
      %13 = vector.load %arg3[%12, %c0_4] : memref<16x128xf32, #tpu.memory_space<vmem>>, vector<1x128xf32>
      %14 = vector.shape_cast %13 : vector<1x128xf32> to vector<128xf32>
      %15 = vector.shape_cast %10 : vector<128xf32> to vector<1x128xf32>
      tpu.vector_store %arg3[%12, %c0_4], %15 {strides = array<i32>} : memref<16x128xf32, #tpu.memory_space<vmem>>, vector<1x128xf32>,
      %c1_i32_5 = arith.constant 1 : i32
      %16 = arith.addi %3, %c1_i32_5 : i32
      %17 = arith.index_cast %16 : i32 to index
      %18 = memref.load %arg1[%17] : memref<16xi32, #tpu.memory_space<smem>>
      %19 = arith.index_cast %18 : i32 to index
      %c0_6 = arith.constant 0 : index
      %20 = vector.load %arg2[%19, %c0_6] : memref<64x128xf32, #tpu.memory_space<vmem>>, vector<1x128xf32>
      %21 = vector.shape_cast %20 : vector<1x128xf32> to vector<128xf32>
      %c1_i32_7 = arith.constant 1 : i32
      %22 = arith.addi %4, %c1_i32_7 : i32
      %23 = arith.index_cast %22 : i32 to index
      %c0_8 = arith.constant 0 : index
      %24 = vector.load %arg3[%23, %c0_8] : memref<16x128xf32, #tpu.memory_space<vmem>>, vector<1x128xf32>
      %25 = vector.shape_cast %24 : vector<1x128xf32> to vector<128xf32>
      %26 = vector.shape_cast %21 : vector<128xf32> to vector<1x128xf32>
      tpu.vector_store %arg3[%23, %c0_8], %26 {strides = array<i32>} : memref<16x128xf32, #tpu.memory_space<vmem>>, vector<1x128xf32>,
      %c2_i32_9 = arith.constant 2 : i32
      %27 = arith.addi %3, %c2_i32_9 : i32
      %28 = arith.index_cast %27 : i32 to index
      %29 = memref.load %arg1[%28] : memref<16xi32, #tpu.memory_space<smem>>
      %30 = arith.index_cast %29 : i32 to index
      %c0_10 = arith.constant 0 : index
      %31 = vector.load %arg2[%30, %c0_10] : memref<64x128xf32, #tpu.memory_space<vmem>>, vector<1x128xf32>
      %32 = vector.shape_cast %31 : vector<1x128xf32> to vector<128xf32>
      %c2_i32_11 = arith.constant 2 : i32
      %33 = arith.addi %4, %c2_i32_11 : i32
      %34 = arith.index_cast %33 : i32 to index
      %c0_12 = arith.constant 0 : index
      %35 = vector.load %arg3[%34, %c0_12] : memref<16x128xf32, #tpu.memory_space<vmem>>, vector<1x128xf32>
      %36 = vector.shape_cast %35 : vector<1x128xf32> to vector<128xf32>
      %37 = vector.shape_cast %32 : vector<128xf32> to vector<1x128xf32>
      tpu.vector_store %arg3[%34, %c0_12], %37 {strides = array<i32>} : memref<16x128xf32, #tpu.memory_space<vmem>>, vector<1x128xf32>,
      %c3_i32 = arith.constant 3 : i32
      %38 = arith.addi %3, %c3_i32 : i32
      %39 = arith.index_cast %38 : i32 to index
      %40 = memref.load %arg1[%39] : memref<16xi32, #tpu.memory_space<smem>>
      %41 = arith.index_cast %40 : i32 to index
      %c0_13 = arith.constant 0 : index
      %42 = vector.load %arg2[%41, %c0_13] : memref<64x128xf32, #tpu.memory_space<vmem>>, vector<1x128xf32>
      %43 = vector.shape_cast %42 : vector<1x128xf32> to vector<128xf32>
      %c3_i32_14 = arith.constant 3 : i32
      %44 = arith.addi %4, %c3_i32_14 : i32
      %45 = arith.index_cast %44 : i32 to index
      %c0_15 = arith.constant 0 : index
      %46 = vector.load %arg3[%45, %c0_15] : memref<16x128xf32, #tpu.memory_space<vmem>>, vector<1x128xf32>
      %47 = vector.shape_cast %46 : vector<1x128xf32> to vector<128xf32>
      %48 = vector.shape_cast %43 : vector<128xf32> to vector<1x128xf32>
      tpu.vector_store %arg3[%45, %c0_15], %48 {strides = array<i32>} : memref<16x128xf32, #tpu.memory_space<vmem>>, vector<1x128xf32>,
      %c4_i32 = arith.constant 4 : i32
      %49 = arith.addi %3, %c4_i32 : i32
      %50 = arith.index_cast %49 : i32 to index
      %51 = memref.load %arg1[%50] : memref<16xi32, #tpu.memory_space<smem>>
      %52 = arith.index_cast %51 : i32 to index
      %c0_16 = arith.constant 0 : index
      %53 = vector.load %arg2[%52, %c0_16] : memref<64x128xf32, #tpu.memory_space<vmem>>, vector<1x128xf32>
      %54 = vector.shape_cast %53 : vector<1x128xf32> to vector<128xf32>
      %c4_i32_17 = arith.constant 4 : i32
      %55 = arith.addi %4, %c4_i32_17 : i32
      %56 = arith.index_cast %55 : i32 to index
      %c0_18 = arith.constant 0 : index
      %57 = vector.load %arg3[%56, %c0_18] : memref<16x128xf32, #tpu.memory_space<vmem>>, vector<1x128xf32>
      %58 = vector.shape_cast %57 : vector<1x128xf32> to vector<128xf32>
      %59 = vector.shape_cast %54 : vector<128xf32> to vector<1x128xf32>
      tpu.vector_store %arg3[%56, %c0_18], %59 {strides = array<i32>} : memref<16x128xf32, #tpu.memory_space<vmem>>, vector<1x128xf32>,
      %c5_i32 = arith.constant 5 : i32
      %60 = arith.addi %3, %c5_i32 : i32
      %61 = arith.index_cast %60 : i32 to index
      %62 = memref.load %arg1[%61] : memref<16xi32, #tpu.memory_space<smem>>
      %63 = arith.index_cast %62 : i32 to index
      %c0_19 = arith.constant 0 : index
      %64 = vector.load %arg2[%63, %c0_19] : memref<64x128xf32, #tpu.memory_space<vmem>>, vector<1x128xf32>
      %65 = vector.shape_cast %64 : vector<1x128xf32> to vector<128xf32>
      %c5_i32_20 = arith.constant 5 : i32
      %66 = arith.addi %4, %c5_i32_20 : i32
      %67 = arith.index_cast %66 : i32 to index
      %c0_21 = arith.constant 0 : index
      %68 = vector.load %arg3[%67, %c0_21] : memref<16x128xf32, #tpu.memory_space<vmem>>, vector<1x128xf32>
      %69 = vector.shape_cast %68 : vector<1x128xf32> to vector<128xf32>
      %70 = vector.shape_cast %65 : vector<128xf32> to vector<1x128xf32>
      tpu.vector_store %arg3[%67, %c0_21], %70 {strides = array<i32>} : memref<16x128xf32, #tpu.memory_space<vmem>>, vector<1x128xf32>,
      %c6_i32 = arith.constant 6 : i32
      %71 = arith.addi %3, %c6_i32 : i32
      %72 = arith.index_cast %71 : i32 to index
      %73 = memref.load %arg1[%72] : memref<16xi32, #tpu.memory_space<smem>>
      %74 = arith.index_cast %73 : i32 to index
      %c0_22 = arith.constant 0 : index
      %75 = vector.load %arg2[%74, %c0_22] : memref<64x128xf32, #tpu.memory_space<vmem>>, vector<1x128xf32>
      %76 = vector.shape_cast %75 : vector<1x128xf32> to vector<128xf32>
      %c6_i32_23 = arith.constant 6 : i32
      %77 = arith.addi %4, %c6_i32_23 : i32
      %78 = arith.index_cast %77 : i32 to index
      %c0_24 = arith.constant 0 : index
      %79 = vector.load %arg3[%78, %c0_24] : memref<16x128xf32, #tpu.memory_space<vmem>>, vector<1x128xf32>
      %80 = vector.shape_cast %79 : vector<1x128xf32> to vector<128xf32>
      %81 = vector.shape_cast %76 : vector<128xf32> to vector<1x128xf32>
      tpu.vector_store %arg3[%78, %c0_24], %81 {strides = array<i32>} : memref<16x128xf32, #tpu.memory_space<vmem>>, vector<1x128xf32>,
      %c7_i32 = arith.constant 7 : i32
      %82 = arith.addi %3, %c7_i32 : i32
      %83 = arith.index_cast %82 : i32 to index
      %84 = memref.load %arg1[%83] : memref<16xi32, #tpu.memory_space<smem>>
      %85 = arith.index_cast %84 : i32 to index
      %c0_25 = arith.constant 0 : index
      %86 = vector.load %arg2[%85, %c0_25] : memref<64x128xf32, #tpu.memory_space<vmem>>, vector<1x128xf32>
      %87 = vector.shape_cast %86 : vector<1x128xf32> to vector<128xf32>
      %c7_i32_26 = arith.constant 7 : i32
      %88 = arith.addi %4, %c7_i32_26 : i32
      %89 = arith.index_cast %88 : i32 to index
      %c0_27 = arith.constant 0 : index
      %90 = vector.load %arg3[%89, %c0_27] : memref<16x128xf32, #tpu.memory_space<vmem>>, vector<1x128xf32>
      %91 = vector.shape_cast %90 : vector<1x128xf32> to vector<128xf32>
      %92 = vector.shape_cast %87 : vector<128xf32> to vector<1x128xf32>
      tpu.vector_store %arg3[%89, %c0_27], %92 {strides = array<i32>} : memref<16x128xf32, #tpu.memory_space<vmem>>, vector<1x128xf32>,
    }
    %c2_i32_0 = arith.constant 2 : i32
    return
  }
  func.func @transform_0(%arg0: i32, %arg1: memref<16xi32, #tpu.memory_space<smem>>) -> (i32, i32) {
    %c0_i32 = arith.constant 0 : i32
    %c0_i32_0 = arith.constant 0 : i32
    %c0_i32_1 = arith.constant 0 : i32
    return %c0_i32, %c0_i32_0 : i32, i32
  }
  func.func @transform_1(%arg0: i32, %arg1: memref<16xi32, #tpu.memory_space<smem>>) -> (i32, i32) {
    %c0_i32 = arith.constant 0 : i32
    %c0_i32_0 = arith.constant 0 : i32
    return %arg0, %c0_i32 : i32, i32
  }
}

</mosaic_0001>

<llo_original>
// kernel: tpu_custom_call.1
$region0: #{tpu_custom_call.1}
  #allocation0 [shape = 'u32[]', space=smem, size = 0x4, offset = 0x4, fixed_abs, tag = 'smem constant byte address 0x4 - core index']
  #allocation1 [shape = 'u32[144,128]{1,0:T(1,128)}', space=vmem, size = 0x12000, scoped, tag = 'internal scratch']
  #allocation2 [shape = 's32[1]{0}', space=sflag, size = 0x4, scoped, tag = 'scoped memory for tpu_custom_call.1']
  #allocation3 [shape = 'u8[512]{0}', space=smem, size = 0x200, scoped, tag = 'prefetched SMEM operand 0']
  %s0 = inlined_call_operand.hbm [shape: s32[16], index: 0, kind: input, shape index: {}]
  %s1 = inlined_call_operand.hbm [shape: f32[64,128], index: 1, kind: input, shape index: {}]
  %s2 = inlined_call_operand.hbm [shape: f32[16,128], index: 2, kind: output, shape index: {}]
  %s3 = sld [smem:[#allocation0]]
  $region25: #{tpu_custom_call.1} parent=0
    _
  %s5 = ssub.s32 1, %s3
  %s6 = scalar_select 0, %s5, %s3
  %8 = dma.hbm_to_smem %s0, 16, [#allocation3], [#allocation2]
  %9 = dma.done [#allocation2], 16
  %10 = sfence
  $region1: #{tpu_custom_call.1} parent=0
    #allocation4 [shape = 'u8[32768]{0}', space=vmem, size = 0x8000, scoped, tag = 'input window, operand 1, single buffered']
    #allocation5 [shape = 's32[1]{0}', space=sflag, size = 0x4, scoped, tag = 'scoped memory for tpu_custom_call.1']
    #allocation6 [shape = 's32[1]{0}', space=sflag, size = 0x4, scoped, tag = 'scoped memory for tpu_custom_call.1']
    #allocation7 [shape = 'u8[8192]{0}', space=vmem, size = 0x2000, scoped, tag = 'output window, operand 0, single buffered']
    %11 = vsyncpa [#allocation5], 0
    %12 = vsyncpa [#allocation6], 0
    // Predicated region
    $region2: #{tpu_custom_call.1} parent=1 // pred_check
      _
    $region3: #{tpu_custom_call.1} parent=1 // pred_check_branch
      %14 = sbr.rel (0) target = $region5
    $region4: #{tpu_custom_call.1} parent=1 // pred_region
      %s16 = ssub.s32 1024, 1024
      %17 = vsyncadd [#allocation5], %s16
      %s18 = sshll.u32 [#allocation4], 4
      %s19 = int_to_ptr.vmem [resolvable:$true] %s18
      %24 = dma.hbm_to_vmem [thread:$0]  %s1, 1024, %s19, [#allocation5], 128, 128, 8
    $region5: #{tpu_custom_call.1} parent=1 // pred_fallthru
      _
    // Predicated region
    $region6: #{tpu_custom_call.1} parent=1 // pred_check
      _
    $region7: #{tpu_custom_call.1} parent=1 // pred_check_branch
      %26 = sbr.rel (0) target = $region9
    $region8: #{tpu_custom_call.1} parent=1 // pred_region
      %27 = dma.done [#allocation5], 1024
    $region9: #{tpu_custom_call.1} parent=1 // pred_fallthru
      _
    %s28 = smul.u32 0, 16
    loop: start=0, step=1, limit=2
    $region10: #{tpu_custom_call.1} parent=1 // loop_pre_header
      _
    $region11: #{tpu_custom_call.1} parent=1 // loop_header
      %s30 = sphi 0, %s34
      %p31 = scmp.ge.s32.totalorder %s30, 2
    $region12: #{tpu_custom_call.1} parent=1 // loop_header_branch
      %33 = sbr.rel (%p31) target = $region16
    $region13: #{tpu_custom_call.1} parent=1 // loop_body
      %s35 = smul.u32 %s30, 8
      %s36 = sadd.s32 %s28, %s35
      %s37 = sld [smem:[#allocation3 + %s36]]
      %s38 = scalar_lea.vmem [#allocation4], %s37
      %v39 = vld [vmem:[%s38] sm:$0x1]
      %s40 = scalar_lea.vmem [#allocation7], %s35
      %41 = vst [vmem:[%s40] sm:$0x1] %v39
      %s42 = sadd.s32 %s36, 1
      %s43 = sld [smem:[#allocation3 + %s42]]
      %s44 = scalar_lea.vmem [#allocation4], %s43
      %v45 = vld [vmem:[%s44] sm:$0x1]
      %s46 = sadd.s32 %s35, 1
      %s47 = scalar_lea.vmem [#allocation7], %s46
      %48 = vst [vmem:[%s47] sm:$0x1] %v45
      %s49 = sadd.s32 %s36, 2
      %s50 = sld [smem:[#allocation3 + %s49]]
      %s51 = scalar_lea.vmem [#allocation4], %s50
      %v52 = vld [vmem:[%s51] sm:$0x1]
      %s53 = sadd.s32 %s35, 2
      %s54 = scalar_lea.vmem [#allocation7], %s53
      %55 = vst [vmem:[%s54] sm:$0x1] %v52
      %s56 = sadd.s32 %s36, 3
      %s57 = sld [smem:[#allocation3 + %s56]]
      %s58 = scalar_lea.vmem [#allocation4], %s57
      %v59 = vld [vmem:[%s58] sm:$0x1]
      %s60 = sadd.s32 %s35, 3
      %s61 = scalar_lea.vmem [#allocation7], %s60
      %62 = vst [vmem:[%s61] sm:$0x1] %v59
      %s63 = sadd.s32 %s36, 4
      %s64 = sld [smem:[#allocation3 + %s63]]
      %s65 = scalar_lea.vmem [#allocation4], %s64
      %v66 = vld [vmem:[%s65] sm:$0x1]
      %s67 = sadd.s32 %s35, 4
      %s68 = scalar_lea.vmem [#allocation7], %s67
      %69 = vst [vmem:[%s68] sm:$0x1] %v66
      %s70 = sadd.s32 %s36, 5
      %s71 = sld [smem:[#allocation3 + %s70]]
      %s72 = scalar_lea.vmem [#allocation4], %s71
      %v73 = vld [vmem:[%s72] sm:$0x1]
      %s74 = sadd.s32 %s35, 5
      %s75 = scalar_lea.vmem [#allocation7], %s74
      %76 = vst [vmem:[%s75] sm:$0x1] %v73
      %s77 = sadd.s32 %s36, 6
      %s78 = sld [smem:[#allocation3 + %s77]]
      %s79 = scalar_lea.vmem [#allocation4], %s78
      %v80 = vld [vmem:[%s79] sm:$0x1]
      %s81 = sadd.s32 %s35, 6
      %s82 = scalar_lea.vmem [#allocation7], %s81
      %83 = vst [vmem:[%s82] sm:$0x1] %v80
      %s84 = sadd.s32 %s36, 7
      %s85 = sld [smem:[#allocation3 + %s84]]
      %s86 = scalar_lea.vmem [#allocation4], %s85
      %v87 = vld [vmem:[%s86] sm:$0x1]
      %s88 = sadd.s32 %s35, 7
      %s89 = scalar_lea.vmem [#allocation7], %s88
      %90 = vst [vmem:[%s89] sm:$0x1] %v87
    $region14: #{tpu_custom_call.1} parent=1 // loop_footer
      %s34 = sadd.s32 1, %s30
    $region15: #{tpu_custom_call.1} parent=1 // loop_footer_branch
      %29 = sbr.rel target = $region11
    $region16: #{tpu_custom_call.1} parent=1 // loop_exit
      _
    // Predicated region
    $region17: #{tpu_custom_call.1} parent=1 // pred_check
      _
    $region18: #{tpu_custom_call.1} parent=1 // pred_check_branch
      %92 = sbr.rel (0) target = $region20
    $region19: #{tpu_custom_call.1} parent=1 // pred_region
      %s94 = ssub.s32 256, 256
      %95 = vsyncadd [#allocation6], %s94
      %s96 = sshll.u32 [#allocation7], 4
      %s97 = int_to_ptr.vmem [resolvable:$true] %s96
      %102 = dma.vmem_to_hbm [thread:$0]  %s97, 256, %s2, [#allocation6], 128, 128, 8
    $region20: #{tpu_custom_call.1} parent=1 // pred_fallthru
      _
    // Predicated region
    $region21: #{tpu_custom_call.1} parent=1 // pred_check
      _
    $region22: #{tpu_custom_call.1} parent=1 // pred_check_branch
      %104 = sbr.rel (0) target = $region24
    $region23: #{tpu_custom_call.1} parent=1 // pred_region
      %105 = dma.done [#allocation6], 256
    $region24: #{tpu_custom_call.1} parent=1 // pred_fallthru
      _
    %106 = vsyncpa [#allocation5], 1
    %107 = vsyncpa [#allocation6], 1

</llo_original>
